<compile_context>
chip_gen: v7x
topology: tpu7x:2x2x1
jax: 0.10.0
libtpu: 0.0.40
codegen_flags: <defaults>
</compile_context>

<pallas_src>
import jax
import jax.numpy as jnp
from jax.experimental import pallas as pl
from jax.experimental.pallas import tpu as pltpu


def _round_up(a: int, b: int) -> int:
    return (a + b - 1) // b * b


def _matmul_kernel(x_ref, w_ref, o_ref):
    # x_ref: (tm, K), w_ref: (K, tn), o_ref: (tm, tn)
    o_ref[...] = jnp.dot(
        x_ref[...], w_ref[...], preferred_element_type=jnp.float32
    ).astype(o_ref.dtype)


def _physical_vmem_bytes() -> int:
    try:
        return int(pltpu.get_tpu_info().vmem_capacity_bytes)
    except Exception:
        return 64 * 1024 * 1024  # conservative fallback (v7x per-core VMEM)


def transp_conv3d_block(
    x,
    weight,
    *,
    tm=None,                        # requested M tile (auto-sized if None)
    compute_dtype=jnp.bfloat16,     # native MXU input dtype on v5e/v6e/v7x
    out_dtype=jnp.bfloat16,         # f32 output doubles the dominant HBM write
    channels_last=False,            # True -> return (N, 2D, 2H, 2W, C_out), no heavy transpose
    vmem_tile_budget_bytes=None,    # generation-aware if None
    vmem_limit_bytes=None,          # generation-aware if None
):
    """ConvTranspose3d, kernel=2, stride=2, padding=0, bias=False.

    x:      (N, C_in, D, H, W)
    weight: (C_in, C_out, 2, 2, 2)  (PyTorch ConvTranspose3d weight layout)
    returns (N, C_out, 2D, 2H, 2W)       if channels_last=False (module semantics)
            (N, 2D, 2H, 2W, C_out)       if channels_last=True  (cheaper glue)
    """
    N, C_in, D, H, W = x.shape
    assert weight.shape[0] == C_in and weight.shape[2:] == (2, 2, 2)
    C_out = weight.shape[1]

    # --- generation-aware VMEM budgets -------------------------------------
    phys = _physical_vmem_bytes()
    big_vmem = phys >= 96 * 1024 * 1024            # v5e / v6e (128 MiB)
    if vmem_tile_budget_bytes is None:
        vmem_tile_budget_bytes = (64 if big_vmem else 30) * 1024 * 1024
    if vmem_limit_bytes is None:
        vmem_limit_bytes = (100 if big_vmem else 40) * 1024 * 1024
    if tm is None:
        tm = 4096 if big_vmem else 2048

    # --- input glue: NCDHW -> (M, C_in) rows ordered (n,d,h,w), MXU dtype ---
    # TODO(synk): if the surrounding model runs channels-last (NDHWC), this
    # transpose (a full HBM round trip of x) disappears entirely.
    x_rows = (
        jnp.transpose(x, (0, 2, 3, 4, 1))
        .reshape(N * D * H * W, C_in)
        .astype(compute_dtype)
    )
    # weight: (C_in, C_out, kd, kh, kw) -> (C_in, kd*kh*kw*C_out); C_out kept
    # innermost so the channel axis stays in the lane dim through the glue.
    w_mat = (
        jnp.transpose(weight, (0, 2, 3, 4, 1))
        .reshape(C_in, 8 * C_out)
        .astype(compute_dtype)
    )

    M = N * D * H * W
    Ncols = 8 * C_out

    # --- K padding (exact): helps MXU K-tiles for misaligned large C_in -----
    K = C_in
    if C_in >= 128 and C_in % 128 != 0:
        K = _round_up(C_in, 128)
        x_rows = jnp.pad(x_rows, ((0, 0), (0, K - C_in)))
        w_mat = jnp.pad(w_mat, ((0, K - C_in), (0, 0)))

    # --- lane-dense output: pad lane axis to a multiple of 128 (unmasked vst)
    Ncols_p = _round_up(Ncols, 128)
    if Ncols_p != Ncols:
        w_mat = jnp.pad(w_mat, ((0, 0), (0, Ncols_p - Ncols)))

    in_bytes = jnp.dtype(compute_dtype).itemsize
    out_bytes = jnp.dtype(out_dtype).itemsize

    # --- column tile: keep the whole lane axis in ONE block whenever the
    # (double-buffered) weight fits a fraction of the tile budget, so the
    # weight is never re-streamed per M tile.
    weight_budget = vmem_tile_budget_bytes // 2
    if 2 * K * Ncols_p * in_bytes <= weight_budget:
        tn = Ncols_p
    else:
        tn = max(128, (weight_budget // (2 * K * in_bytes)) // 128 * 128)
        tn = min(tn, Ncols_p)
    gn = pl.cdiv(Ncols_p, tn)

    def _tile_vmem_bytes(tm_):
        return (
            2 * tm_ * K * in_bytes      # double-buffered x tile
            + 2 * K * tn * in_bytes     # weight (double-buffered by default)
            + 2 * tm_ * tn * out_bytes  # double-buffered output tile
            + tm_ * tn * 4              # f32 dot result before the astype
        )

    # --- M tile: largest multiple of 8 fitting the VMEM budget; >= 2 tiles
    # so v7x megacore can split the parallel M axis.
    if M < 8:
        tm_eff = M
    else:
        tm_eff = max(8, min(tm, (M // 8) * 8))
        tm_eff = (tm_eff // 8) * 8
        while tm_eff > 8 and _tile_vmem_bytes(tm_eff) > vmem_tile_budget_bytes:
            tm_eff = max(8, (tm_eff // 2 // 8) * 8)
        if pl.cdiv(M, tm_eff) == 1 and M >= 16:
            tm_eff = max(8, _round_up(pl.cdiv(M, 2), 8))
    gm = pl.cdiv(M, tm_eff)

    cost = pl.CostEstimate(
        flops=2 * M * K * Ncols_p,
        transcendentals=0,
        bytes_accessed=(
            M * K * in_bytes + K * Ncols_p * in_bytes + M * Ncols_p * out_bytes
        ),
    )

    if gn == 1:
        # Common case: single lane-dense column block; weight block index is
        # constant so it is DMA'd once and stays resident.
        # TODO(synk): pipeline_mode=pl.Buffered(1) on the weight spec would
        # reclaim its second VMEM buffer (lets the auto-sizer pick a larger tm).
        grid = (gm,)
        in_specs = [
            pl.BlockSpec((tm_eff, K), lambda i: (i, 0)),
            pl.BlockSpec((K, tn), lambda i: (0, 0)),
        ]
        out_specs = pl.BlockSpec((tm_eff, tn), lambda i: (i, 0))
        dims = ("parallel",)
    else:
        # Rare very-wide case: column axis OUTERMOST so the weight block stays
        # resident across the whole inner M loop (no per-M-tile re-streaming).
        grid = (gn, gm)
        in_specs = [
            pl.BlockSpec((tm_eff, K), lambda j, i: (i, 0)),
            pl.BlockSpec((K, tn), lambda j, i: (0, j)),
        ]
        out_specs = pl.BlockSpec((tm_eff, tn), lambda j, i: (i, j))
        dims = ("parallel", "parallel")

    y_mat = pl.pallas_call(
        _matmul_kernel,
        out_shape=jax.ShapeDtypeStruct((M, Ncols_p), out_dtype),
        grid_spec=pltpu.PrefetchScalarGridSpec(
            num_scalar_prefetch=0,
            grid=grid,
            in_specs=in_specs,
            out_specs=out_specs,
        ),
        compiler_params=pltpu.CompilerParams(
            dimension_semantics=dims,
            vmem_limit_bytes=vmem_limit_bytes,
        ),
        cost_estimate=cost,
    )(x_rows, w_mat)

    # --- output glue --------------------------------------------------------
    if Ncols_p != Ncols:
        y_mat = y_mat[:, :Ncols]   # no-op for real channel counts (8*C_out % 128 == 0)
    # Free reshape: (M, 8*C_out) has the identical memory layout to
    # (N, D, H, W, 2, 2, 2, C_out).
    y = y_mat.reshape(N, D, H, W, 2, 2, 2, C_out)
    if channels_last:
        # Cheap path: C_out stays in the innermost (lane) dim.
        y = jnp.transpose(y, (0, 1, 4, 2, 5, 3, 6, 7))
        return y.reshape(N, 2 * D, 2 * H, 2 * W, C_out)
    # NCDHW (exact PyTorch semantics). NOTE: this transpose is an extra HBM
    # round trip of the largest tensor; prefer channels_last=True when the
    # consumer can take NDHWC.
    y = jnp.transpose(y, (0, 7, 1, 4, 2, 5, 3, 6))  # (N, C_out, D,kd, H,kh, W,kw)
    return y.reshape(N, C_out, 2 * D, 2 * H, 2 * W)


def _reference(x, weight, cast_dtype=None):
    # Independent einsum reference of the transposed-conv semantics (NCDHW).
    N, C_in, D, H, W = x.shape
    C_out = weight.shape[1]
    if cast_dtype is not None:
        x = x.astype(cast_dtype)
        weight = weight.astype(cast_dtype)
    t = jnp.einsum(
        "ncdhw,coijk->nodihjwk", x, weight, preferred_element_type=jnp.float32
    )
    return t.reshape(N, C_out, 2 * D, 2 * H, 2 * W).astype(jnp.float32)


if __name__ == "__main__":
    key = jax.random.PRNGKey(0)
    kx, kw = jax.random.split(key)

    N, C_in, C_out = 2, 4, 8
    D = H = W = 4  # M = N*D*H*W = 128, lane axis 8*C_out = 64 -> padded to 128

    x = jax.random.normal(kx, (N, C_in, D, H, W), dtype=jnp.float32)
    # PyTorch ConvTranspose3d weight shape: (in_planes, out_planes, 2, 2, 2)
    weight = jax.random.normal(kw, (C_in, C_out, 2, 2, 2), dtype=jnp.float32) * 0.1

    # Default path: NCDHW output (module semantics), bf16 compute + bf16 store.
    y = jax.block_until_ready(transp_conv3d_block(x, weight))
    assert y.shape == (N, C_out, 2 * D, 2 * H, 2 * W)
    y_f32 = jnp.asarray(y, jnp.float32)

    # Tight check vs a reference using the same bf16 input rounding.
    y_ref_bf16 = _reference(x, weight, cast_dtype=jnp.bfloat16)
    assert jnp.allclose(y_f32, y_ref_bf16, atol=1e-2, rtol=1e-2)

    # Loose check vs the full-f32 module semantics (drift = bf16 rounding).
    y_ref_f32 = _reference(x, weight)
    assert jnp.allclose(y_f32, y_ref_f32, atol=3e-2, rtol=3e-2)

    # Cheap channels-last path matches the NCDHW path exactly.
    y_cl = jax.block_until_ready(transp_conv3d_block(x, weight, channels_last=True))
    assert y_cl.shape == (N, 2 * D, 2 * H, 2 * W, C_out)
    assert jnp.array_equal(jnp.transpose(y_cl, (0, 4, 1, 2, 3)), y)

    print("KERNEL_OK")
</pallas_src>

<mosaic_0001>
module attributes {stable_mosaic.version = 11 : i64} {
  func.func @_matmul_kernel(%arg0: i32, %arg1: memref<64x4xbf16, #tpu.memory_space<vmem>>, %arg2: memref<4x128xbf16, #tpu.memory_space<vmem>>, %arg3: memref<64x128xbf16, #tpu.memory_space<vmem>>) attributes {dimension_semantics = [#tpu.dimension_semantics<parallel>], iteration_bounds = array<i64: 2>, scalar_prefetch = 0 : i64, scratch_operands = 0 : i64, tpu.core_type = #tpu.core_type<tc>, window_params = [{transform_indices = @transform_0, window_bounds = array<i64: 64, 4>}, {pipeline_mode = #tpu.pipeline_mode<synchronous>, transform_indices = @transform_1, window_bounds = array<i64: 4, 128>}, {transform_indices = @transform_2, window_bounds = array<i64: 64, 128>}]} {
    %c0 = arith.constant 0 : index
    %c0_0 = arith.constant 0 : index
    %0 = vector.load %arg1[%c0, %c0_0] : memref<64x4xbf16, #tpu.memory_space<vmem>>, vector<64x4xbf16>
    %c0_1 = arith.constant 0 : index
    %c0_2 = arith.constant 0 : index
    %1 = vector.load %arg2[%c0_1, %c0_2] : memref<4x128xbf16, #tpu.memory_space<vmem>>, vector<4x128xbf16>
    %cst = arith.constant dense<0.000000e+00> : vector<64x128xf32>
    %2 = tpu.matmul %0, %1, %cst {dimension_numbers = #tpu.dot_dimension_numbers<[1], [0], [0], [1], [0, 0, 1, 1], [], []>} : vector<64x4xbf16>, vector<4x128xbf16>, vector<64x128xf32> -> vector<64x128xf32>
    %3 = arith.truncf %2 : vector<64x128xf32> to vector<64x128xbf16>
    %c0_3 = arith.constant 0 : index
    %c0_4 = arith.constant 0 : index
    %4 = vector.load %arg3[%c0_3, %c0_4] : memref<64x128xbf16, #tpu.memory_space<vmem>>, vector<64x128xbf16>
    tpu.vector_store %arg3[%c0_3, %c0_4], %3 {strides = array<i32>} : memref<64x128xbf16, #tpu.memory_space<vmem>>, vector<64x128xbf16>,
    return
  }
  func.func @transform_0(%arg0: i32) -> (i32, i32) {
    %c0_i32 = arith.constant 0 : i32
    %c0_i32_0 = arith.constant 0 : i32
    return %arg0, %c0_i32 : i32, i32
  }
  func.func @transform_1(%arg0: i32) -> (i32, i32) {
    %c0_i32 = arith.constant 0 : i32
    %c0_i32_0 = arith.constant 0 : i32
    %c0_i32_1 = arith.constant 0 : i32
    return %c0_i32, %c0_i32_0 : i32, i32
  }
  func.func @transform_2(%arg0: i32) -> (i32, i32) {
    %c0_i32 = arith.constant 0 : i32
    %c0_i32_0 = arith.constant 0 : i32
    return %arg0, %c0_i32 : i32, i32
  }
}

</mosaic_0001>

<llo_original>
// kernel: tpu_custom_call.1
$region0: #{tpu_custom_call.1}
  #allocation0 [shape = 'u32[]', space=smem, size = 0x4, offset = 0x4, fixed_abs, tag = 'smem constant byte address 0x4 - core index']
  #allocation1 [shape = 'u32[144,128]{1,0:T(1,128)}', space=vmem, size = 0x12000, scoped, tag = 'internal scratch']
  %s0 = inlined_call_operand.vmem [shape: bf16[128,4], index: 0, kind: input, shape index: {}]
  %s1 = inlined_call_operand.vmem [shape: bf16[4,128], index: 1, kind: input, shape index: {}]
  %s2 = inlined_call_operand.hbm [shape: bf16[128,128], index: 2, kind: output, shape index: {}]
  %s3 = sld [smem:[#allocation0]]
  $region41: #{tpu_custom_call.1} parent=0
    _
  %s5 = ssub.s32 1, %s3
  %s6 = scalar_select 0, %s5, %s3
  $region1: #{tpu_custom_call.1} parent=0
    #allocation2 [shape = 'u8[32768]{0}', space=vmem, size = 0x8000, scoped, tag = 'output window, operand 0']
    #allocation3 [shape = 's32[2]{0}', space=sflag, size = 0x8, scoped, tag = 'scoped memory for tpu_custom_call.1']
    %7 = vsyncpa [#allocation3], 0
    %s8 = scalar_lea.sflag [#allocation3], 1
    %9 = vsyncpa %s8, 0
    loop: start=0, step=1, limit=4
    $region2: #{tpu_custom_call.1} parent=1 // loop_pre_header
      _
    $region3: #{tpu_custom_call.1} parent=1 // loop_header
      %s11 = sphi 0, %s15
      %p12 = scmp.ge.s32.totalorder %s11, 4
      %s21 = sphi 0, %s23
      %s24 = sphi 0, %s21
      %s25 = sphi 0, %s24
      %s41 = sphi 0, %s25
      %s45 = sphi 0, %s45
      %s47 = sphi 0, %s45
      %s48 = sphi 0, %s47
      %s62 = sphi 0, %s48
      %s68 = sphi 0, %s70
      %s71 = sphi 0, %s68
      %s72 = sphi 0, %s71
      %s88 = sphi 0, %s72
    $region4: #{tpu_custom_call.1} parent=1 // loop_header_branch
      %14 = sbr.rel (%p12) target = $region8
    $region5: #{tpu_custom_call.1} parent=1 // loop_body
      %s16 = ssub.s32 %s11, 1
      %s17 = ssub.s32 %s11, 2
      %s18 = sadd.s32 %s11, 1
      %s19 = ssub.s32 %s11, %s18
      %p20 = scmp.eq.s32.totalorder %s19, 0
      %s22 = sadd.s32 %s21, 1
      %s23 = scalar_select %p20, %s21, %s22
      %p26 = pneg %p20
      %p27 = scmp.eq.s32.totalorder %s11, 1
      %p28 = por %p26, %p27
      %p29 = scmp.ne.s32.totalorder %s21, %s24
      %p30 = scmp.eq.s32.totalorder %s11, 0
      %p31 = por %p29, %p30
      %p32 = scmp.ne.s32.totalorder %s21, %s24
      %p33 = scmp.eq.s32.totalorder %s16, 1
      %p34 = por %p32, %p33
      %p35 = scmp.ne.s32.totalorder %s24, %s25
      %p36 = scmp.eq.s32.totalorder %s16, 0
      %p37 = por %p35, %p36
      %p38 = scmp.ne.s32.totalorder %s24, %s25
      %p39 = scmp.eq.s32.totalorder %s17, 1
      %p40 = por %p38, %p39
      %p42 = scmp.ne.s32.totalorder %s25, %s41
      %p43 = scmp.eq.s32.totalorder %s17, 0
      %p44 = por %p42, %p43
      %s46 = sadd.s32 %s45, 1
      %p49 = scmp.eq.s32.totalorder %s11, 1
      %p50 = scmp.ne.s32.totalorder %s45, %s47
      %p51 = scmp.eq.s32.totalorder %s11, 0
      %p52 = por %p50, %p51
      %p53 = scmp.ne.s32.totalorder %s45, %s47
      %p54 = scmp.eq.s32.totalorder %s16, 1
      %p55 = por %p53, %p54
      %p56 = scmp.ne.s32.totalorder %s47, %s48
      %p57 = scmp.eq.s32.totalorder %s16, 0
      %p58 = por %p56, %p57
      %p59 = scmp.ne.s32.totalorder %s47, %s48
      %p60 = scmp.eq.s32.totalorder %s17, 1
      %p61 = por %p59, %p60
      %p63 = scmp.ne.s32.totalorder %s48, %s62
      %p64 = scmp.eq.s32.totalorder %s17, 0
      %p65 = por %p63, %p64
      %s66 = ssub.s32 %s11, %s18
      %p67 = scmp.eq.s32.totalorder %s66, 0
      %s69 = sadd.s32 %s68, 1
      %s70 = scalar_select %p67, %s68, %s69
      %p73 = pneg %p67
      %p74 = scmp.eq.s32.totalorder %s11, 1
      %p75 = por %p73, %p74
      %p76 = scmp.ne.s32.totalorder %s68, %s71
      %p77 = scmp.eq.s32.totalorder %s11, 0
      %p78 = por %p76, %p77
      %p79 = scmp.ne.s32.totalorder %s68, %s71
      %p80 = scmp.eq.s32.totalorder %s16, 1
      %p81 = por %p79, %p80
      %p82 = scmp.ne.s32.totalorder %s71, %s72
      %p83 = scmp.eq.s32.totalorder %s16, 0
      %p84 = por %p82, %p83
      %p85 = scmp.ne.s32.totalorder %s71, %s72
      %p86 = scmp.eq.s32.totalorder %s17, 1
      %p87 = por %p85, %p86
      %p89 = scmp.ne.s32.totalorder %s72, %s88
      %p90 = scmp.eq.s32.totalorder %s17, 0
      %p91 = por %p89, %p90
      %p92 = scmp.le.s32.totalorder 1, %s11
      %p93 = scmp.lt.s32.totalorder %s11, 3
      %p94 = pnand %p92, %p93
      %p95 = pneg %p94
      // Predicated region
      $region9: #{tpu_custom_call.1} parent=5 // pred_check
        _
      $region10: #{tpu_custom_call.1} parent=5 // pred_check_branch
        %97 = sbr.rel (%p94) target = $region12
      $region11: #{tpu_custom_call.1} parent=5 // pred_region
        %s98 = ssub.s32 %s11, 1
        // Predicated region
        $region13: #{tpu_custom_call.1} parent=11 // pred_check
          %p99 = pneg %p58
        $region14: #{tpu_custom_call.1} parent=11 // pred_check_branch
          %101 = sbr.rel (%p99) target = $region16
        $region15: #{tpu_custom_call.1} parent=11 // pred_region
          _
        $region16: #{tpu_custom_call.1} parent=11 // pred_fallthru
          _
      $region12: #{tpu_custom_call.1} parent=5 // pred_fallthru
        _
      %p102 = scmp.lt.s32.totalorder %s11, 2
      // Predicated region
      $region17: #{tpu_custom_call.1} parent=5 // pred_check
        %p103 = pneg %p102
      $region18: #{tpu_custom_call.1} parent=5 // pred_check_branch
        %105 = sbr.rel (%p103) target = $region20
      $region19: #{tpu_custom_call.1} parent=5 // pred_region
        // Predicated region
        $region21: #{tpu_custom_call.1} parent=19 // pred_check
          %p106 = pneg %p31
        $region22: #{tpu_custom_call.1} parent=19 // pred_check_branch
          %108 = sbr.rel (%p106) target = $region24
        $region23: #{tpu_custom_call.1} parent=19 // pred_region
          %s109 = smul.u32 8, %s11
          %p110 = scmp.lt.s32.totalorder %s109, 15
          %s111 = scalar_select %p110, %s109, 15
          %s112 = smul.addr %s111, 4
          %s113 = scalar_lea.vmem %s0, %s112
          %s114 = smul.u32 8, %s11
        $region24: #{tpu_custom_call.1} parent=19 // pred_fallthru
          _
      $region20: #{tpu_custom_call.1} parent=5 // pred_fallthru
        _
      %p115 = scmp.le.s32.totalorder 1, %s11
      %p116 = scmp.lt.s32.totalorder %s11, 3
      %p117 = pnand %p115, %p116
      %p118 = pneg %p117
      // Predicated region
      $region25: #{tpu_custom_call.1} parent=5 // pred_check
        _
      $region26: #{tpu_custom_call.1} parent=5 // pred_check_branch
        %120 = sbr.rel (%p117) target = $region28
      $region27: #{tpu_custom_call.1} parent=5 // pred_region
        %s121 = ssub.s32 %s11, 1
        %s122 = smul.u32 8, %s16
        %p123 = scmp.lt.s32.totalorder %s122, 15
        %s124 = scalar_select %p123, %s122, 15
        %s125 = smul.addr %s124, 4
        %s126 = scalar_lea.vmem %s0, %s125
        %p127 = pneg %p37
        %p128 = pneg %p34
        %p129 = pneg %p58
        %p130 = pneg %p55
        %p131 = pneg %p84
        %p132 = pneg %p81
        %s133 = sand.u32 %s71, 1
        %s134 = scalar_lea.sflag [#allocation3], %s133
        %s135 = sand.u32 %s71, 1
        %s136 = smul.addr %s135, 32
        %s137 = scalar_lea.vmem [#allocation2], %s136
        %s138 = smul.u32 8, %s16
        %p139 = scmp.lt.s32.totalorder %s138, 15
        %s140 = scalar_select %p139, %s138, 15
        %s141 = smul.addr %s140, 4
        %s142 = scalar_lea.vmem %s0, %s141
        %s143 = smul.u32 8, %s16
        %s144 = smul.u32 8, %s16
        %v146 = vld [vmem:[%s142] sm:$0xf]
        %v147 = vld [vmem:[%s142 + $0x4] sm:$0xf]
        %v148 = vld [vmem:[%s142 + $0x8] sm:$0xf]
        %v149 = vld [vmem:[%s142 + $0xc] sm:$0xf]
        %v150 = vld [vmem:[%s142 + $0x10] sm:$0xf]
        %v151 = vld [vmem:[%s142 + $0x14] sm:$0xf]
        %v152 = vld [vmem:[%s142 + $0x18] sm:$0xf]
        %v153 = vld [vmem:[%s142 + $0x1c] sm:$0xf]
        %v154 = vld [vmem:[%s1] sm:$0x3]
        %v163 = vunpack.c.l.b16 %v146
        %v164 = vunpack.c.l.b16 %v147
        %v165 = vunpack.c.l.b16 %v148
        %v166 = vunpack.c.l.b16 %v149
        %v167 = vunpack.c.l.b16 %v150
        %v168 = vunpack.c.l.b16 %v151
        %v169 = vunpack.c.l.b16 %v152
        %v170 = vunpack.c.l.b16 %v153
        %v171 = vpack.c.b16 %v164, %v163
        %v172 = vpack.c.b16 %v166, %v165
        %v173 = vpack.c.b16 %v168, %v167
        %v174 = vpack.c.b16 %v170, %v169
        %vm175 = vcmask 31744
        %v177 = vsel %vm175, %v171, 0
        %v180 = vsel %vm175, %v172, 0
        %v183 = vsel %vm175, %v173, 0
        %v186 = vsel %vm175, %v174, 0
        %vm188 = vcmask 1041408
        %v190 = vsel %vm188, %v154, 0
        %192 = vmatprep.subr.bf16.mxu0 0
        %193 = vmatpush1.bf16.msra.mxu0 %v190
        %194 = vmatprep.subr.bf16.mxu0 0
        %195 = vmatpush1.bf16.msra.mxu0 0
        %196 = vmatprep.subr.bf16.mxu0 0
        %197 = vmatpush1.bf16.msra.mxu0 0
        %198 = vmatprep.subr.bf16.mxu0 0
        %199 = vmatpush1.bf16.msra.mxu0 0
        %200 = vmatprep.subr.bf16.mxu0 0
        %201 = vmatpush1.bf16.msra.mxu0 0
        %202 = vmatprep.subr.bf16.mxu0 0
        %203 = vmatpush1.bf16.msra.mxu0 0
        %204 = vmatprep.subr.bf16.mxu0 0
        %205 = vmatpush1.bf16.msra.mxu0 0
        %206 = vmatprep.subr.bf16.mxu0 0
        %207 = vmatpush1.bf16.msra.mxu0 0
        %208 = vmatprep.subr.bf16.mxu0 0
        %209 = vmatpush1.bf16.msra.mxu0 0
        %210 = vmatprep.subr.bf16.mxu0 0
        %211 = vmatpush1.bf16.msra.mxu0 0
        %212 = vmatprep.subr.bf16.mxu0 0
        %213 = vmatpush1.bf16.msra.mxu0 0
        %214 = vmatprep.subr.bf16.mxu0 0
        %215 = vmatpush1.bf16.msra.mxu0 0
        %216 = vmatprep.subr.bf16.mxu0 0
        %217 = vmatpush1.bf16.msra.mxu0 0
        %218 = vmatprep.subr.bf16.mxu0 0
        %219 = vmatpush1.bf16.msra.mxu0 0
        %220 = vmatprep.subr.bf16.mxu0 0
        %221 = vmatpush1.bf16.msra.mxu0 0
        %222 = vmatprep.subr.bf16.mxu0 0
        %223 = vmatpush1.bf16.msra.mxu0 0
        %224 = vmatprep.mubr.bf16.mxu0 0
        %225 = vmatmul.mubr.bf16.gmra.mrb[0].mxu0 %v177
        %v226 = vpop.f32.mrb[0].mxu0
        %v227 = vadd.f32 0.0, %v226
        %v228 = vpop.f32.mrb[0].mxu0
        %v229 = vpop.f32.mrb[0].mxu0
        %v230 = vadd.f32 0.0, %v229
        %v231 = vpop.f32.mrb[0].mxu0
        %232 = vmatprep.mubr.bf16.mxu0 0
        %233 = vmatmul.mubr.bf16.gmra.mrb[0].mxu0 %v180
        %v234 = vpop.f32.mrb[0].mxu0
        %v235 = vadd.f32 0.0, %v234
        %v236 = vpop.f32.mrb[0].mxu0
        %v237 = vpop.f32.mrb[0].mxu0
        %v238 = vadd.f32 0.0, %v237
        %v239 = vpop.f32.mrb[0].mxu0
        %240 = vmatprep.mubr.bf16.mxu0 0
        %241 = vmatmul.mubr.bf16.gmra.mrb[0].mxu0 %v183
        %v242 = vpop.f32.mrb[0].mxu0
        %v243 = vadd.f32 0.0, %v242
        %v244 = vpop.f32.mrb[0].mxu0
        %v245 = vpop.f32.mrb[0].mxu0
        %v246 = vadd.f32 0.0, %v245
        %v247 = vpop.f32.mrb[0].mxu0
        %248 = vmatprep.mubr.bf16.mxu0 0
        %249 = vmatmul.mubr.bf16.gmra.mrb[0].mxu0 %v186
        %v250 = vpop.f32.mrb[0].mxu0
        %v251 = vadd.f32 0.0, %v250
        %v252 = vpop.f32.mrb[0].mxu0
        %v253 = vpop.f32.mrb[0].mxu0
        %v254 = vadd.f32 0.0, %v253
        %v255 = vpop.f32.mrb[0].mxu0
        %256 = vdwg.mxu0
        %v257 = vpack.c.bf16 %v230, %v227
        %v258 = vpack.c.bf16 %v238, %v235
        %v259 = vpack.c.bf16 %v246, %v243
        %v260 = vpack.c.bf16 %v254, %v251
        %v265 = vunpack.c.l.b16 %v257
        %v266 = vunpack.c.h.b16 %v257
        %v267 = vunpack.c.l.b16 %v258
        %v268 = vunpack.c.h.b16 %v258
        %v269 = vunpack.c.l.b16 %v259
        %v270 = vunpack.c.h.b16 %v259
        %v271 = vunpack.c.l.b16 %v260
        %v272 = vunpack.c.h.b16 %v260
        %v273 = vpack.c.b16 %v265, %v265
        %v274 = vpack.c.b16 %v266, %v266
        %v275 = vpack.c.b16 %v267, %v267
        %v276 = vpack.c.b16 %v268, %v268
        %v277 = vpack.c.b16 %v269, %v269
        %v278 = vpack.c.b16 %v270, %v270
        %v279 = vpack.c.b16 %v271, %v271
        %v280 = vpack.c.b16 %v272, %v272
        %289 = vst [vmem:[%s137] sm:$0xf] %v273
        %290 = vst [vmem:[%s137 + $0x4] sm:$0xf] %v274
        %291 = vst [vmem:[%s137 + $0x8] sm:$0xf] %v275
        %292 = vst [vmem:[%s137 + $0xc] sm:$0xf] %v276
        %293 = vst [vmem:[%s137 + $0x10] sm:$0xf] %v277
        %294 = vst [vmem:[%s137 + $0x14] sm:$0xf] %v278
        %295 = vst [vmem:[%s137 + $0x18] sm:$0xf] %v279
        %296 = vst [vmem:[%s137 + $0x1c] sm:$0xf] %v280
        %s297 = sand.u32 %s71, 1
        %s298 = scalar_lea.sflag [#allocation3], %s297
        %s299 = sand.u32 %s71, 1
        %s300 = smul.addr %s299, 32
        %s301 = scalar_lea.vmem [#allocation2], %s300
        // Predicated region
        $region29: #{tpu_custom_call.1} parent=27 // pred_check
          %p302 = pneg %p81
        $region30: #{tpu_custom_call.1} parent=27 // pred_check_branch
          %304 = sbr.rel (%p302) target = $region32
        $region31: #{tpu_custom_call.1} parent=27 // pred_region
          %s305 = smul.u32 8, %s16
          %s307 = ssub.s32 512, 512
          %308 = vsyncadd %s298, %s307
          %s309 = smul.addr %s305, 64
          %s310 = scalar_lea.hbm %s2, %s309
          %s311 = sshll.u32 %s301, 4
          %s312 = int_to_ptr.vmem [resolvable:$true] %s311
          %317 = dma.vmem_to_hbm [thread:$0]  %s312, 512, %s310, %s298, 64, 64, 4
        $region32: #{tpu_custom_call.1} parent=27 // pred_fallthru
          _
      $region28: #{tpu_custom_call.1} parent=5 // pred_fallthru
        _
      %p318 = scmp.le.s32.totalorder 2, %s11
      // Predicated region
      $region33: #{tpu_custom_call.1} parent=5 // pred_check
        %p319 = pneg %p318
      $region34: #{tpu_custom_call.1} parent=5 // pred_check_branch
        %321 = sbr.rel (%p319) target = $region36
      $region35: #{tpu_custom_call.1} parent=5 // pred_region
        %s322 = ssub.s32 %s11, 2
        // Predicated region
        $region37: #{tpu_custom_call.1} parent=35 // pred_check
          %p323 = pneg %p87
        $region38: #{tpu_custom_call.1} parent=35 // pred_check_branch
          %325 = sbr.rel (%p323) target = $region40
        $region39: #{tpu_custom_call.1} parent=35 // pred_region
          %s326 = sand.u32 %s72, 1
          %s327 = scalar_lea.sflag [#allocation3], %s326
          %s328 = sand.u32 %s72, 1
          %s329 = smul.addr %s328, 32
          %s330 = scalar_lea.vmem [#allocation2], %s329
          %331 = dma.done %s327, 512
        $region40: #{tpu_custom_call.1} parent=35 // pred_fallthru
          _
      $region36: #{tpu_custom_call.1} parent=5 // pred_fallthru
        _
    $region6: #{tpu_custom_call.1} parent=1 // loop_footer
      %s15 = sadd.s32 1, %s11
    $region7: #{tpu_custom_call.1} parent=1 // loop_footer_branch
      %10 = sbr.rel target = $region3
    $region8: #{tpu_custom_call.1} parent=1 // loop_exit
      _
    %332 = vsyncpa [#allocation3], 1
    %s333 = scalar_lea.sflag [#allocation3], 1
    %334 = vsyncpa %s333, 1

</llo_original>
